<compile_context>
chip_gen: v6e
topology: v6e:2x2x1
jax: 0.10.0
libtpu: 0.0.40
codegen_flags: <defaults>
</compile_context>

<pallas_src>
import functools

import jax
import jax.numpy as jnp
from jax import lax
from jax.experimental import pallas as pl
from jax.experimental.pallas import tpu as pltpu


def _stats_kernel(q_ref, keys_ref, rmax_ref, rsum_ref):
    """Pass 1: online max / exp-sum over the query (lane) axis for every memory slot."""
    t = pl.program_id(0)

    @pl.when(t == 0)
    def _():
        rmax_ref[...] = jnp.full_like(rmax_ref, -jnp.inf)
        rsum_ref[...] = jnp.zeros_like(rsum_ref)

    # F.normalize(query, dim=channel) on the (C, TN) tile (channel = sublane axis).
    q_raw = q_ref[...]                                      # (C, TN)
    sumsq = jnp.sum(q_raw * q_raw, axis=0, keepdims=True)   # (1, TN)
    q = q_raw * lax.rsqrt(jnp.maximum(sumsq, 1e-24))

    # score_t = keys @ q -> (M, TN); N rides the 128-lane axis.
    score = lax.dot_general(keys_ref[...], q, (((1,), (0,)), ((), ())),
                            preferred_element_type=jnp.float32)

    tile_max = jnp.max(score, axis=1, keepdims=True)        # (M, 1)
    new_max = jnp.maximum(rmax_ref[...], tile_max)
    corr = jnp.exp(rmax_ref[...] - new_max)                 # 0 at t == 0 (-inf init)
    tile_sum = jnp.sum(jnp.exp(score - new_max), axis=1, keepdims=True)
    rsum_ref[...] = rsum_ref[...] * corr + tile_sum
    rmax_ref[...] = new_max


def _memory_kernel(rmax_ref, rsum_ref, q_ref, keys_ref, keys_t_ref,
                   uq_ref, um_ref, sq_ref, sm_ref, gl_ref, sl_ref,
                   *, n_total):
    t = pl.program_id(0)
    num_t = pl.num_programs(0)
    c, tn = q_ref.shape
    m = keys_ref.shape[0]

    @pl.when(t == 0)
    def _():
        um_ref[...] = jnp.zeros_like(um_ref)   # accumulates query_update (M, C)
        gl_ref[...] = jnp.zeros_like(gl_ref)
        sl_ref[...] = jnp.zeros_like(sl_ref)

    keys = keys_ref[...]        # (M, C)
    keys_t = keys_t_ref[...]    # (C, M)

    # F.normalize(query, dim=channel): rsqrt keeps the per-query divide off the VALU.
    q_raw = q_ref[...]                                      # (C, TN)
    sumsq = jnp.sum(q_raw * q_raw, axis=0, keepdims=True)   # (1, TN)
    q = q_raw * lax.rsqrt(jnp.maximum(sumsq, 1e-24))

    # score_t[i, n] = <keys[i], q[:, n]>  -> (M, TN)
    score = lax.dot_general(keys, q, (((1,), (0,)), ((), ())),
                            preferred_element_type=jnp.float32)

    # softmax over memory slots (per query; sublane axis). Reciprocal on the EUP.
    cmax = jnp.max(score, axis=0, keepdims=True)            # (1, TN)
    e_m = jnp.exp(score - cmax)
    sm = e_m * pl.reciprocal(jnp.sum(e_m, axis=0, keepdims=True), approx=True)
    sm_ref[...] = sm

    # softmax over queries (per memory slot; lane axis) using the global pass-1 stats.
    e_q = jnp.exp(score - rmax_ref[...])                    # (M, TN)
    sq_ref[...] = e_q * pl.reciprocal(rsum_ref[...], approx=True)

    # top-1 / top-2 memory slot per query (argmax over sublanes; reuses cmax).
    row_ids = lax.broadcasted_iota(jnp.int32, (m, tn), 0)
    idx1 = jnp.min(jnp.where(score == cmax, row_ids, m), axis=0, keepdims=True)
    onehot1 = (row_ids == idx1).astype(jnp.float32)         # (M, TN)
    score2 = jnp.where(row_ids == idx1, jnp.finfo(jnp.float32).min, score)
    max2 = jnp.max(score2, axis=0, keepdims=True)
    idx2 = jnp.min(jnp.where(score2 == max2, row_ids, m), axis=0, keepdims=True)
    onehot2 = (row_ids == idx2).astype(jnp.float32)

    # keys[top1] / keys[top2] as lane-dense (C, TN) via one-hot matmuls on the MXU.
    pos = jnp.dot(keys_t, onehot1, preferred_element_type=jnp.float32)
    neg = jnp.dot(keys_t, onehot2, preferred_element_type=jnp.float32)

    # gathering loss: MSE(query, keys[top1]) — accumulate raw sum, scale at the end.
    diff = q - pos
    gl_ref[...] += jnp.sum(jnp.sum(diff * diff, axis=0, keepdims=True),
                           axis=1, keepdims=True)

    # spreading loss: TripletMarginLoss(margin=1.0, p=2, eps=1e-6); exact sqrt here.
    dp_v = q - pos + 1e-6
    dn_v = q - neg + 1e-6
    dp = jnp.sqrt(jnp.sum(dp_v * dp_v, axis=0, keepdims=True))   # (1, TN)
    dn = jnp.sqrt(jnp.sum(dn_v * dn_v, axis=0, keepdims=True))
    tl = jnp.maximum(dp - dn + 1.0, 0.0)
    sl_ref[...] += jnp.sum(tl, axis=1, keepdims=True)

    # read: updated_query = concat(query, sm @ keys), emitted lane-dense as (2C, TN)
    # with two slice stores (no concatenate copy, no masked partial stores).
    concat_mem = jnp.dot(keys_t, sm, preferred_element_type=jnp.float32)  # (C, TN)
    uq_ref[:c, :] = q
    uq_ref[c:, :] = concat_mem

    # update: weight = onehot1 * sq / max_n sq[:, i]; the softmax denominator cancels,
    # so weight == onehot1 * exp(score - rowmax) and e_q is reused directly.
    weight = onehot1 * e_q                                  # (M, TN)
    # (M, TN) x (C, TN) contracting the lane axis of both operands -> (M, C).
    um_ref[...] += lax.dot_general(weight, q, (((1,), (1,)), ((), ())),
                                   preferred_element_type=jnp.float32)

    @pl.when(t == num_t - 1)
    def _():
        gl_ref[...] = gl_ref[...] * (1.0 / (n_total * c))
        sl_ref[...] = sl_ref[...] * (1.0 / n_total)
        new_mem = um_ref[...] + keys
        msumsq = jnp.sum(new_mem * new_mem, axis=1, keepdims=True)
        um_ref[...] = new_mem * lax.rsqrt(jnp.maximum(msumsq, 1e-24))


def _pick_block_n(n, max_block_n):
    """Largest multiple-of-128 divisor of n that is <= max_block_n (else full n)."""
    if n <= max_block_n or n % 128 != 0:
        return n
    cap = (max_block_n // 128) * 128
    for cand in range(cap, 0, -128):
        if n % cand == 0:
            return cand
    return n


def memory_forward(query_nchw, keys, *, max_block_n=512):
    """train=True forward of Memory: returns
    (updated_query NCHW(2C), updated_memory, softmax_score_query,
     softmax_score_memory, gathering_loss, spreading_loss).
    `max_block_n` is the per-generation N-tile knob (smaller on v5e/v7x, larger on v6e)."""
    b, c, h, w = query_nchw.shape
    m, c2 = keys.shape
    assert c2 == c
    n = b * h * w
    block_n = _pick_block_n(n, max_block_n)
    n_tiles = n // block_n

    # Channel-major (C, N) query so N rides the 128-lane axis inside the kernels;
    # the (b, h, w) flattening order matches the module's NHWC .view(N, C).
    q_t = jnp.transpose(query_nchw.astype(jnp.float32), (1, 0, 2, 3)).reshape(c, n)
    keys_f = keys.astype(jnp.float32)
    keys_t = keys_f.T                                       # (C, M), tiny

    # TODO(synk): per-core partial accumulators would allow marking the N axis
    # "parallel" for megacore; kept "arbitrary" because the loss / update / softmax
    # statistics are carried across N tiles in resident outputs.
    arb = pltpu.CompilerParams(dimension_semantics=("arbitrary",))

    # Pass 1: global per-memory-slot max / exp-sum over all queries.
    rowmax, rowsum = pl.pallas_call(
        _stats_kernel,
        grid=(n_tiles,),
        in_specs=[pl.BlockSpec((c, block_n), lambda t: (0, t)),
                  pl.BlockSpec((m, c), lambda t: (0, 0))],
        out_specs=(pl.BlockSpec((m, 1), lambda t: (0, 0)),
                   pl.BlockSpec((m, 1), lambda t: (0, 0))),
        out_shape=(jax.ShapeDtypeStruct((m, 1), jnp.float32),
                   jax.ShapeDtypeStruct((m, 1), jnp.float32)),
        compiler_params=arb,
    )(q_t, keys_f)

    # Pass 2: softmaxes, top-1/top-2, read, losses, memory update.
    kernel = functools.partial(_memory_kernel, n_total=n)
    uq_t, um, sq_t, sm_t, gl, sl = pl.pallas_call(
        kernel,
        grid=(n_tiles,),
        in_specs=[pl.BlockSpec((m, 1), lambda t: (0, 0)),
                  pl.BlockSpec((m, 1), lambda t: (0, 0)),
                  pl.BlockSpec((c, block_n), lambda t: (0, t)),
                  pl.BlockSpec((m, c), lambda t: (0, 0)),
                  pl.BlockSpec((c, m), lambda t: (0, 0))],
        out_specs=(pl.BlockSpec((2 * c, block_n), lambda t: (0, t)),
                   pl.BlockSpec((m, c), lambda t: (0, 0)),
                   pl.BlockSpec((m, block_n), lambda t: (0, t)),
                   pl.BlockSpec((m, block_n), lambda t: (0, t)),
                   pl.BlockSpec((1, 1), lambda t: (0, 0)),
                   pl.BlockSpec((1, 1), lambda t: (0, 0))),
        out_shape=(jax.ShapeDtypeStruct((2 * c, n), jnp.float32),
                   jax.ShapeDtypeStruct((m, c), jnp.float32),
                   jax.ShapeDtypeStruct((m, n), jnp.float32),
                   jax.ShapeDtypeStruct((m, n), jnp.float32),
                   jax.ShapeDtypeStruct((1, 1), jnp.float32),
                   jax.ShapeDtypeStruct((1, 1), jnp.float32)),
        compiler_params=arb,
    )(rowmax, rowsum, q_t, keys_f, keys_t)

    # (2C, N) -> (B, 2C, H, W); sq/sm back to the module's (N, M) orientation.
    updated_query = jnp.transpose(uq_t.reshape(2 * c, b, h, w), (1, 0, 2, 3))
    return updated_query, um, sq_t.T, sm_t.T, gl[0, 0], sl[0, 0]


def memory_forward_ref(query_nchw, keys):
    """Pure-JAX reference mirroring the PyTorch forward (train=True)."""
    b, c, h, w = query_nchw.shape
    n = b * h * w
    m = keys.shape[0]
    qn = query_nchw / jnp.maximum(
        jnp.linalg.norm(query_nchw, axis=1, keepdims=True), 1e-12)
    q = jnp.transpose(qn, (0, 2, 3, 1)).reshape(n, c)
    score = q @ keys.T
    sq = jax.nn.softmax(score, axis=0)
    sm = jax.nn.softmax(score, axis=1)
    order = jnp.argsort(-score, axis=1)
    idx1, idx2 = order[:, 0], order[:, 1]
    pos, neg = keys[idx1], keys[idx2]
    gl = jnp.mean((q - pos) ** 2)
    dp = jnp.sqrt(jnp.sum((q - pos + 1e-6) ** 2, axis=1))
    dn = jnp.sqrt(jnp.sum((q - neg + 1e-6) ** 2, axis=1))
    sl = jnp.mean(jnp.maximum(dp - dn + 1.0, 0.0))
    concat = sm @ keys
    uq = jnp.transpose(jnp.concatenate([q, concat], axis=1).reshape(b, h, w, 2 * c),
                       (0, 3, 1, 2))
    onehot1 = jax.nn.one_hot(idx1, m, dtype=jnp.float32)
    weight = onehot1 * sq / jnp.max(sq, axis=0, keepdims=True)
    qu = weight.T @ q
    new_mem = qu + keys
    um = new_mem / jnp.maximum(jnp.linalg.norm(new_mem, axis=1, keepdims=True), 1e-12)
    return uq, um, sq, sm, gl, sl


if __name__ == "__main__":
    # Small shapes consistent with the module: memory_size=16, feature_dim=key_dim=32.
    B, C, H, W, M = 2, 32, 8, 8, 16
    key = jax.random.PRNGKey(0)
    kq, kk, kq2 = jax.random.split(key, 3)
    query = jax.random.normal(kq, (B, C, H, W), dtype=jnp.float32)
    keys = jax.random.normal(kk, (M, C), dtype=jnp.float32)
    keys = keys / jnp.linalg.norm(keys, axis=1, keepdims=True)  # deterministic init

    outs = jax.block_until_ready(memory_forward(query, keys))
    refs = memory_forward_ref(query, keys)

    uq, um, sq, sm, gl, sl = outs
    assert uq.shape == (B, 2 * C, H, W)
    assert um.shape == (M, C)
    assert sq.shape == (B * H * W, M) and sm.shape == (B * H * W, M)
    for o, r in zip(outs, refs):
        assert jnp.all(jnp.isfinite(o)), "non-finite output"
        assert jnp.allclose(o, r, rtol=1e-2, atol=1e-2), "mismatch vs reference"

    # Exercise the gridded (multi-tile, two-pass) path: N = 4*8*8 = 256 with 128-query tiles.
    query2 = jax.random.normal(kq2, (4, C, H, W), dtype=jnp.float32)
    outs2 = jax.block_until_ready(memory_forward(query2, keys, max_block_n=128))
    refs2 = memory_forward_ref(query2, keys)
    for o, r in zip(outs2, refs2):
        assert jnp.all(jnp.isfinite(o)), "non-finite output (tiled)"
        assert jnp.allclose(o, r, rtol=1e-2, atol=1e-2), "mismatch vs reference (tiled)"

    print("KERNEL_OK")
</pallas_src>

<mosaic_0001>
module attributes {stable_mosaic.version = 11 : i64} {
  func.func @_stats_kernel(%arg0: i32, %arg1: memref<32x128xf32, #tpu.memory_space<vmem>>, %arg2: memref<16x32xf32, #tpu.memory_space<vmem>>, %arg3: memref<16x1xf32, #tpu.memory_space<vmem>>, %arg4: memref<16x1xf32, #tpu.memory_space<vmem>>) attributes {dimension_semantics = [#tpu.dimension_semantics<arbitrary>], iteration_bounds = array<i64: 1>, scalar_prefetch = 0 : i64, scratch_operands = 0 : i64, tpu.core_type = #tpu.core_type<tc>, window_params = [{transform_indices = @transform_0, window_bounds = array<i64: 32, 128>}, {pipeline_mode = #tpu.pipeline_mode<synchronous>, transform_indices = @transform_1, window_bounds = array<i64: 16, 32>}, {pipeline_mode = #tpu.pipeline_mode<synchronous>, transform_indices = @transform_2, window_bounds = array<i64: 16, 1>}, {pipeline_mode = #tpu.pipeline_mode<synchronous>, transform_indices = @transform_3, window_bounds = array<i64: 16, 1>}]} {
    %c0_i32 = arith.constant 0 : i32
    %0 = arith.cmpi eq, %arg0, %c0_i32 : i32
    %1 = arith.extui %0 : i1 to i32
    %c0_i32_0 = arith.constant 0 : i32
    %2 = arith.cmpi ne, %1, %c0_i32_0 : i32
    scf.if %2 {
      %cst_18 = arith.constant 0xFF800000 : f32
      %31 = vector.broadcast %cst_18 : f32 to vector<16x1xf32>
      %c0_19 = arith.constant 0 : index
      %c0_20 = arith.constant 0 : index
      %32 = vector.load %arg3[%c0_19, %c0_20] : memref<16x1xf32, #tpu.memory_space<vmem>>, vector<16x1xf32>
      tpu.vector_store %arg3[%c0_19, %c0_20], %31 {strides = array<i32>} : memref<16x1xf32, #tpu.memory_space<vmem>>, vector<16x1xf32>,
      %cst_21 = arith.constant 0.000000e+00 : f32
      %33 = vector.broadcast %cst_21 : f32 to vector<16x1xf32>
      %c0_22 = arith.constant 0 : index
      %c0_23 = arith.constant 0 : index
      %34 = vector.load %arg4[%c0_22, %c0_23] : memref<16x1xf32, #tpu.memory_space<vmem>>, vector<16x1xf32>
      tpu.vector_store %arg4[%c0_22, %c0_23], %33 {strides = array<i32>} : memref<16x1xf32, #tpu.memory_space<vmem>>, vector<16x1xf32>,
    } else {
    }
    %c0 = arith.constant 0 : index
    %c0_1 = arith.constant 0 : index
    %3 = vector.load %arg1[%c0, %c0_1] : memref<32x128xf32, #tpu.memory_space<vmem>>, vector<32x128xf32>
    %4 = arith.mulf %3, %3 : vector<32x128xf32>
    %cst = arith.constant dense<0.000000e+00> : vector<128xf32>
    %5 = vector.multi_reduction <add>, %4, %cst [0] : vector<32x128xf32> to vector<128xf32>
    %6 = vector.shape_cast %5 : vector<128xf32> to vector<1x128xf32>
    %cst_2 = arith.constant 1.000000e-24 : f32
    %7 = vector.broadcast %cst_2 : f32 to vector<1x128xf32>
    %8 = arith.maximumf %6, %7 : vector<1x128xf32>
    %9 = math.rsqrt %8 : vector<1x128xf32>
    %10 = vector.broadcast %9 : vector<1x128xf32> to vector<32x128xf32>
    %11 = arith.mulf %3, %10 : vector<32x128xf32>
    %c0_3 = arith.constant 0 : index
    %c0_4 = arith.constant 0 : index
    %12 = vector.load %arg2[%c0_3, %c0_4] : memref<16x32xf32, #tpu.memory_space<vmem>>, vector<16x32xf32>
    %cst_5 = arith.constant dense<0.000000e+00> : vector<16x128xf32>
    %13 = tpu.matmul %12, %11, %cst_5 {dimension_numbers = #tpu.dot_dimension_numbers<[1], [0], [0], [1], [0, 0, 1, 1], [], []>} : vector<16x32xf32>, vector<32x128xf32>, vector<16x128xf32> -> vector<16x128xf32>
    %cst_6 = arith.constant dense<0xFF800000> : vector<16xf32>
    %14 = vector.multi_reduction <maximumf>, %13, %cst_6 [1] : vector<16x128xf32> to vector<16xf32>
    %15 = vector.shape_cast %14 : vector<16xf32> to vector<16x1xf32>
    %c0_7 = arith.constant 0 : index
    %c0_8 = arith.constant 0 : index
    %16 = vector.load %arg3[%c0_7, %c0_8] : memref<16x1xf32, #tpu.memory_space<vmem>>, vector<16x1xf32>
    %17 = arith.maximumf %16, %15 : vector<16x1xf32>
    %c0_9 = arith.constant 0 : index
    %c0_10 = arith.constant 0 : index
    %18 = vector.load %arg3[%c0_9, %c0_10] : memref<16x1xf32, #tpu.memory_space<vmem>>, vector<16x1xf32>
    %19 = arith.subf %18, %17 : vector<16x1xf32>
    %20 = math.exp %19 : vector<16x1xf32>
    %21 = vector.broadcast %17 : vector<16x1xf32> to vector<16x128xf32>
    %22 = arith.subf %13, %21 : vector<16x128xf32>
    %23 = math.exp %22 : vector<16x128xf32>
    %cst_11 = arith.constant dense<0.000000e+00> : vector<16xf32>
    %24 = vector.multi_reduction <add>, %23, %cst_11 [1] : vector<16x128xf32> to vector<16xf32>
    %25 = vector.shape_cast %24 : vector<16xf32> to vector<16x1xf32>
    %c0_12 = arith.constant 0 : index
    %c0_13 = arith.constant 0 : index
    %26 = vector.load %arg4[%c0_12, %c0_13] : memref<16x1xf32, #tpu.memory_space<vmem>>, vector<16x1xf32>
    %27 = arith.mulf %26, %20 : vector<16x1xf32>
    %28 = arith.addf %27, %25 : vector<16x1xf32>
    %c0_14 = arith.constant 0 : index
    %c0_15 = arith.constant 0 : index
    %29 = vector.load %arg4[%c0_14, %c0_15] : memref<16x1xf32, #tpu.memory_space<vmem>>, vector<16x1xf32>
    tpu.vector_store %arg4[%c0_14, %c0_15], %28 {strides = array<i32>} : memref<16x1xf32, #tpu.memory_space<vmem>>, vector<16x1xf32>,
    %c0_16 = arith.constant 0 : index
    %c0_17 = arith.constant 0 : index
    %30 = vector.load %arg3[%c0_16, %c0_17] : memref<16x1xf32, #tpu.memory_space<vmem>>, vector<16x1xf32>
    tpu.vector_store %arg3[%c0_16, %c0_17], %17 {strides = array<i32>} : memref<16x1xf32, #tpu.memory_space<vmem>>, vector<16x1xf32>,
    return
  }
  func.func @transform_0(%arg0: i32) -> (i32, i32) {
    %c0_i32 = arith.constant 0 : i32
    %c0_i32_0 = arith.constant 0 : i32
    return %c0_i32, %arg0 : i32, i32
  }
  func.func @transform_1(%arg0: i32) -> (i32, i32) {
    %c0_i32 = arith.constant 0 : i32
    %c0_i32_0 = arith.constant 0 : i32
    %c0_i32_1 = arith.constant 0 : i32
    return %c0_i32, %c0_i32_0 : i32, i32
  }
  func.func @transform_2(%arg0: i32) -> (i32, i32) {
    %c0_i32 = arith.constant 0 : i32
    %c0_i32_0 = arith.constant 0 : i32
    %c0_i32_1 = arith.constant 0 : i32
    return %c0_i32, %c0_i32_0 : i32, i32
  }
  func.func @transform_3(%arg0: i32) -> (i32, i32) {
    %c0_i32 = arith.constant 0 : i32
    %c0_i32_0 = arith.constant 0 : i32
    %c0_i32_1 = arith.constant 0 : i32
    return %c0_i32, %c0_i32_0 : i32, i32
  }
}

</mosaic_0001>

<llo_original>
// kernel: tpu_custom_call.1
$region0: #{tpu_custom_call.1}
  #allocation0 [shape = 'u32[]', space=smem, size = 0x4, offset = 0x4, fixed_abs, tag = 'smem constant byte address 0x4 - core index']
  #allocation1 [shape = 'u32[144,128]{1,0:T(1,128)}', space=vmem, size = 0x12000, scoped, tag = 'internal scratch']
  %s0 = inlined_call_operand.hbm [shape: f32[32,128], index: 0, kind: input, shape index: {}]
  %s1 = inlined_call_operand.hbm [shape: f32[16,32], index: 1, kind: input, shape index: {}]
  %s2 = inlined_call_operand.vmem [shape: f32[16,1], index: 2, kind: output, shape index: {0}]
  %s3 = inlined_call_operand.vmem [shape: f32[16,1], index: 3, kind: output, shape index: {1}]
  %4 = xla_tuple %s2, %s3
  %s5 = sld [smem:[#allocation0]]
  $region38: #{tpu_custom_call.1} parent=0
    _
  %s7 = ssub.s32 1, %s5
  %s8 = scalar_select 0, %s7, %s5
  $region1: #{tpu_custom_call.1} parent=0
    #allocation2 [shape = 'u8[16384]{0}', space=vmem, size = 0x4000, scoped, tag = 'input window, operand 0, single buffered']
    #allocation3 [shape = 's32[1]{0}', space=sflag, size = 0x4, scoped, tag = 'scoped memory for tpu_custom_call.1']
    #allocation4 [shape = 'u8[8192]{0}', space=vmem, size = 0x2000, scoped, tag = 'input window, operand 1, single buffered']
    #allocation5 [shape = 's32[1]{0}', space=sflag, size = 0x4, scoped, tag = 'scoped memory for tpu_custom_call.1']
    %9 = vsyncpa [#allocation3], 0
    %10 = vsyncpa [#allocation5], 0
    // Predicated region
    $region2: #{tpu_custom_call.1} parent=1 // pred_check
      _
    $region3: #{tpu_custom_call.1} parent=1 // pred_check_branch
      %12 = sbr.rel (0) target = $region5
    $region4: #{tpu_custom_call.1} parent=1 // pred_region
      %s14 = ssub.s32 512, 512
      %15 = vsyncadd [#allocation3], %s14
      %s16 = sshll.u32 [#allocation2], 4
      %s17 = int_to_ptr.vmem [resolvable:$true] %s16
      %22 = dma.hbm_to_vmem [thread:$0]  %s0, 512, %s17, [#allocation3], 128, 128, 8
    $region5: #{tpu_custom_call.1} parent=1 // pred_fallthru
      _
    // Predicated region
    $region6: #{tpu_custom_call.1} parent=1 // pred_check
      _
    $region7: #{tpu_custom_call.1} parent=1 // pred_check_branch
      %24 = sbr.rel (0) target = $region9
    $region8: #{tpu_custom_call.1} parent=1 // pred_region
      %s26 = ssub.s32 256, 256
      %27 = vsyncadd [#allocation5], %s26
      %s28 = sshll.u32 [#allocation4], 4
      %s29 = int_to_ptr.vmem [resolvable:$true] %s28
      %34 = dma.hbm_to_vmem [thread:$0]  %s1, 256, %s29, [#allocation5], 128, 128, 8
    $region9: #{tpu_custom_call.1} parent=1 // pred_fallthru
      _
    // Predicated region
    $region10: #{tpu_custom_call.1} parent=1 // pred_check
      _
    $region11: #{tpu_custom_call.1} parent=1 // pred_check_branch
      %36 = sbr.rel (0) target = $region13
    $region12: #{tpu_custom_call.1} parent=1 // pred_region
      %37 = dma.done [#allocation3], 512
    $region13: #{tpu_custom_call.1} parent=1 // pred_fallthru
      _
    // Predicated region
    $region14: #{tpu_custom_call.1} parent=1 // pred_check
      _
    $region15: #{tpu_custom_call.1} parent=1 // pred_check_branch
      %39 = sbr.rel (0) target = $region17
    $region16: #{tpu_custom_call.1} parent=1 // pred_region
      %40 = dma.done [#allocation5], 256
    $region17: #{tpu_custom_call.1} parent=1 // pred_fallthru
      _
    %p41 = scmp.eq.s32.totalorder 0, 0
    // Predicated region
    $region18: #{tpu_custom_call.1} parent=1 // pred_check
      %p42 = pneg %p41
    $region19: #{tpu_custom_call.1} parent=1 // pred_check_branch
      %44 = sbr.rel (%p42) target = $region21
    $region20: #{tpu_custom_call.1} parent=1 // pred_region
      %vm45 = vcmask 7168
      %46 = vst.msk [vmem:[%s2] sm:$0xff] %vm45, -inf
      %47 = vst.msk [vmem:[%s2 + $0x8] sm:$0xff] %vm45, -inf
      %48 = vst.msk [vmem:[%s3] sm:$0xff] %vm45, 0.0
      %49 = vst.msk [vmem:[%s3 + $0x8] sm:$0xff] %vm45, 0.0
    $region21: #{tpu_custom_call.1} parent=1 // pred_fallthru
      _
    %v50 = vld [vmem:[#allocation2] sm:$0xff]
    %v51 = vld [vmem:[#allocation2 + $0x8] sm:$0xff]
    %v52 = vld [vmem:[#allocation2 + $0x10] sm:$0xff]
    %v53 = vld [vmem:[#allocation2 + $0x18] sm:$0xff]
    %v54 = vmul.f32 %v50, %v50
    %v55 = vmul.f32 %v51, %v51
    %v56 = vmul.f32 %v52, %v52
    %v57 = vmul.f32 %v53, %v53
    %v58 = vadd.f32 %v54, %v55
    %v59 = vadd.f32 %v58, %v56
    %v60 = vadd.f32 %v59, %v57
    %v61 = vrot.slane %v60, 4
    %v62 = vadd.f32 %v60, %v61
    %v63 = vrot.slane %v62, 2
    %v64 = vadd.f32 %v62, %v63
    %v65 = vrot.slane %v64, 1
    %v66 = vadd.f32 %v64, %v65
    %v67 = vmax.f32 %v66, 1e-24
    %v68 = vrsqrt.pop %v67
    %v69 = vmul.f32 %v50, %v68
    %v70 = vmul.f32 %v51, %v68
    %v71 = vmul.f32 %v52, %v68
    %v72 = vmul.f32 %v53, %v68
    %v73 = vld [vmem:[#allocation4] sm:$0xff]
    %v74 = vld [vmem:[#allocation4 + $0x8] sm:$0xff]
    %vm75 = vcmask 261120
    %v77 = vsel %vm75, %v73, 0
    %v80 = vsel %vm75, %v74, 0
    %82 = vmatprep.subr.mxu0 0.0
    %83 = vmatpush1.msra.mxu0 0.0
    %84 = vmatprep.subr.mxu0 0.0
    %85 = vmatpush1.msra.mxu0 0.0
    %86 = vmatprep.subr.mxu0 0.0
    %87 = vmatpush1.msra.mxu0 0.0
    %88 = vmatprep.subr.mxu0 0.0
    %89 = vmatpush1.msra.mxu0 0.0
    %90 = vmatprep.subr.mxu0 0.0
    %91 = vmatpush1.msra.mxu0 0.0
    %92 = vmatprep.subr.mxu0 0.0
    %93 = vmatpush1.msra.mxu0 0.0
    %94 = vmatprep.subr.mxu0 0.0
    %95 = vmatpush1.msra.mxu0 0.0
    %96 = vmatprep.subr.mxu0 0.0
    %97 = vmatpush1.msra.mxu0 0.0
    %98 = vmatprep.subr.mxu0 0.0
    %99 = vmatpush1.msra.mxu0 0.0
    %100 = vmatprep.subr.mxu0 0.0
    %101 = vmatpush1.msra.mxu0 0.0
    %102 = vmatprep.subr.mxu0 0.0
    %103 = vmatpush1.msra.mxu0 0.0
    %104 = vmatprep.subr.mxu0 0.0
    %105 = vmatpush1.msra.mxu0 0.0
    %106 = vmatprep.subr.mxu0 0.0
    %107 = vmatpush1.msra.mxu0 %v72
    %108 = vmatprep.subr.mxu0 0.0
    %109 = vmatpush1.msra.mxu0 %v71
    %110 = vmatprep.subr.mxu0 0.0
    %111 = vmatpush1.msra.mxu0 %v70
    %112 = vmatprep.subr.mxu0 0.0
    %113 = vmatpush1.msra.mxu0 %v69
    %114 = vmatprep.subr.mxu0 0.0
    %115 = vmatpush2.msra.mxu0 0.0
    %116 = vmatprep.subr.mxu0 0.0
    %117 = vmatpush2.msra.mxu0 0.0
    %118 = vmatprep.subr.mxu0 0.0
    %119 = vmatpush2.msra.mxu0 0.0
    %120 = vmatprep.subr.mxu0 0.0
    %121 = vmatpush2.msra.mxu0 0.0
    %122 = vmatprep.subr.mxu0 0.0
    %123 = vmatpush2.msra.mxu0 0.0
    %124 = vmatprep.subr.mxu0 0.0
    %125 = vmatpush2.msra.mxu0 0.0
    %126 = vmatprep.subr.mxu0 0.0
    %127 = vmatpush2.msra.mxu0 0.0
    %128 = vmatprep.subr.mxu0 0.0
    %129 = vmatpush2.msra.mxu0 0.0
    %130 = vmatprep.subr.mxu0 0.0
    %131 = vmatpush2.msra.mxu0 0.0
    %132 = vmatprep.subr.mxu0 0.0
    %133 = vmatpush2.msra.mxu0 0.0
    %134 = vmatprep.subr.mxu0 0.0
    %135 = vmatpush2.msra.mxu0 0.0
    %136 = vmatprep.subr.mxu0 0.0
    %137 = vmatpush2.msra.mxu0 0.0
    %138 = vmatprep.subr.mxu0 0.0
    %139 = vmatpush2.msra.mxu0 0.0
    %140 = vmatprep.subr.mxu0 0.0
    %141 = vmatpush2.msra.mxu0 0.0
    %142 = vmatprep.subr.mxu0 0.0
    %143 = vmatpush2.msra.mxu0 0.0
    %144 = vmatprep.subr.mxu0 0.0
    %145 = vmatpush2.msra.mxu0 0.0
    %146 = vmatprep.mubr.f32.mxu0 0.0
    %147 = vmatmul.mubr.f32.gmra.mxu0 %v77
    %v148 = vpop.f32.mrf.mxu0
    %v149 = vadd.f32 0.0, %v148
    %v150 = vpop.f32.mrf.mxu0
    %151 = vmatprep.mubr.f32.mxu0 0.0
    %152 = vmatmul.mubr.f32.gmra.mxu0 %v80
    %v153 = vpop.f32.mrf.mxu0
    %v154 = vadd.f32 0.0, %v153
    %v155 = vpop.f32.mrf.mxu0
    %156 = vdwg.mxu0
    %157 = vmax.xlane.f32.xlu0 %v149
    %v158 = vpop.xlane.xlu0 %157
    %159 = vmax.xlane.f32.xlu0 %v154
    %v160 = vpop.xlane.xlu0 %159
    %v161 = vld [vmem:[%s2] sm:$0xff]
    %v162 = vld [vmem:[%s2 + $0x8] sm:$0xff]
    %v163 = vmax.f32 %v161, %v158
    %v164 = vmax.f32 %v162, %v160
    %v165 = vsub.f32 %v161, %v163
    %v166 = vsub.f32 %v162, %v164
    %v167 = vmul.f32 %v165, 1.442695
    %v168 = vpow.pop %v167
    %v169 = vmul.f32 %v166, 1.442695
    %v170 = vpow.pop %v169
    %172 = vset.pattern.permute.xlu0 0
    %173 = vperm.xlu0 %172, %v163
    %v174 = vpop.permute.xlu0 %173
    %177 = vset.pattern.permute.xlu0 0
    %178 = vperm.xlu0 %177, %v164
    %v179 = vpop.permute.xlu0 %178
    %v181 = vsub.f32 %v149, %v174
    %v182 = vsub.f32 %v154, %v179
    %v183 = vmul.f32 %v181, 1.442695
    %v184 = vpow.pop %v183
    %v185 = vmul.f32 %v182, 1.442695
    %v186 = vpow.pop %v185
    %187 = vadd.xlane.f32.xlu0 %v184
    %v188 = vpop.xlane.xlu0 %187
    %189 = vadd.xlane.f32.xlu0 %v186
    %v190 = vpop.xlane.xlu0 %189
    %v191 = vld [vmem:[%s3] sm:$0xff]
    %v192 = vld [vmem:[%s3 + $0x8] sm:$0xff]
    %v193 = vmul.f32 %v191, %v168
    %v194 = vmul.f32 %v192, %v170
    %v195 = vadd.f32 %v193, %v188
    %v196 = vadd.f32 %v194, %v190
    %vm197 = vcmask 7168
    %198 = vst.msk [vmem:[%s3] sm:$0xff] %vm197, %v195
    %199 = vst.msk [vmem:[%s3 + $0x8] sm:$0xff] %vm197, %v196
    %200 = vst.msk [vmem:[%s2] sm:$0xff] %vm197, %v163
    %201 = vst.msk [vmem:[%s2 + $0x8] sm:$0xff] %vm197, %v164
    // Predicated region
    $region22: #{tpu_custom_call.1} parent=1 // pred_check
      _
    $region23: #{tpu_custom_call.1} parent=1 // pred_check_branch
      %203 = sbr.rel (0) target = $region25
    $region24: #{tpu_custom_call.1} parent=1 // pred_region
      _
    $region25: #{tpu_custom_call.1} parent=1 // pred_fallthru
      _
    // Predicated region
    $region26: #{tpu_custom_call.1} parent=1 // pred_check
      _
    $region27: #{tpu_custom_call.1} parent=1 // pred_check_branch
      %205 = sbr.rel (0) target = $region29
    $region28: #{tpu_custom_call.1} parent=1 // pred_region
      _
    $region29: #{tpu_custom_call.1} parent=1 // pred_fallthru
      _
    // Predicated region
    $region30: #{tpu_custom_call.1} parent=1 // pred_check
      _
    $region31: #{tpu_custom_call.1} parent=1 // pred_check_branch
      %207 = sbr.rel (0) target = $region33
    $region32: #{tpu_custom_call.1} parent=1 // pred_region
      _
    $region33: #{tpu_custom_call.1} parent=1 // pred_fallthru
      _
    // Predicated region
    $region34: #{tpu_custom_call.1} parent=1 // pred_check
      _
    $region35: #{tpu_custom_call.1} parent=1 // pred_check_branch
      %209 = sbr.rel (0) target = $region37
    $region36: #{tpu_custom_call.1} parent=1 // pred_region
      _
    $region37: #{tpu_custom_call.1} parent=1 // pred_fallthru
      _
    %210 = vsyncpa [#allocation3], 1
    %211 = vsyncpa [#allocation5], 1

</llo_original>
